<compile_context>
chip_gen: v5e
topology: v5e:2x2
jax: 0.10.0
libtpu: 0.0.40
codegen_flags: <defaults>
</compile_context>

<pallas_src>
import functools

import jax
import jax.numpy as jnp
from jax.experimental import pallas as pl
from jax.experimental.pallas import tpu as pltpu

_MIN = 1e-5
_MAX = 1e6

# Candidate lane-dense widths (all multiples of 128), largest first.
_LANE_CANDIDATES = (4096, 2048, 1024, 512, 256, 128)
# ~4 MiB per block (in bytes, dtype-independent).
_TARGET_TILE_BYTES = 4 * 1024 * 1024
# Keep at least this many grid blocks when the array is large enough
# (>= 2 TensorCores x ~4 steps each on v7x; also preserves DMA/compute overlap).
_MIN_GRID_BLOCKS = 8
_VMEM_LIMIT_BYTES = 32 * 1024 * 1024


def _mean_act_kernel(x_ref, o_ref):
    # Upcast to f32 for exp/clip (needed on v5e, free slot-wise in an HBM-bound kernel),
    # cast back on store.
    x = x_ref[...].astype(jnp.float32)
    o_ref[...] = jnp.clip(jnp.exp(x), _MIN, _MAX).astype(o_ref.dtype)


def _mean_act_ref(x):
    """Plain-JAX reference / fallback (same math as the kernel)."""
    return jnp.clip(jnp.exp(x.astype(jnp.float32)), _MIN, _MAX).astype(x.dtype)


def _sublane_multiple(dtype):
    # Native sublane packing: 8 for 4-byte, 16 for 2-byte, 32 for 1-byte dtypes.
    return max(8, 32 // jnp.dtype(dtype).itemsize)


def _run_tiled(x2, *, donate_input):
    """Run the elementwise kernel over a lane-dense (rows, L) array, L % 128 == 0."""
    rows, L = x2.shape
    itemsize = jnp.dtype(x2.dtype).itemsize
    sub = _sublane_multiple(x2.dtype)

    # ~4 MiB per block, rounded to the sublane packing multiple.
    target_elems = max(sub * L, _TARGET_TILE_BYTES // itemsize)
    tr = max(sub, (target_elems // L) // sub * sub)
    # Cap tile height so the grid has >= _MIN_GRID_BLOCKS blocks whenever possible
    # (megacore sharding on v7x + DMA pipelining on all gens).
    tr_cap = max(sub, pl.cdiv(pl.cdiv(rows, _MIN_GRID_BLOCKS), sub) * sub)
    tr = min(tr, tr_cap)
    if tr > rows:
        tr = rows  # full-extent block is always layout-legal
    grid = (pl.cdiv(rows, tr),)  # last block may overhang; Pallas masks it

    return pl.pallas_call(
        _mean_act_kernel,
        out_shape=jax.ShapeDtypeStruct((rows, L), x2.dtype),
        grid_spec=pltpu.PrefetchScalarGridSpec(
            num_scalar_prefetch=0,
            grid=grid,
            in_specs=[pl.BlockSpec((tr, L), lambda i: (i, 0))],
            out_specs=pl.BlockSpec((tr, L), lambda i: (i, 0)),
        ),
        compiler_params=pltpu.CompilerParams(
            dimension_semantics=("parallel",),       # megacore-shardable on v7x
            vmem_limit_bytes=_VMEM_LIMIT_BYTES,      # 16 MiB footprint fits comfortably
        ),
        # Only alias when the caller actually donates x; otherwise XLA would insert a copy.
        input_output_aliases=({0: 0} if donate_input else {}),
    )(x2)


@functools.partial(jax.jit, static_argnames=("min_pallas_size", "donate_input"))
def mean_act(x, *, min_pallas_size=16384, donate_input=False):
    """Elementwise MeanAct via a lane-dense, tiled Pallas TPU kernel."""
    orig_shape = x.shape
    N = x.size

    if N == 0:
        return x
    if N < min_pallas_size or N < 128:
        # Tiny inputs: kernel-launch + per-step overhead dominates; plain JAX is faster.
        return _mean_act_ref(x)

    flat = x.reshape(-1)  # contiguous reshape, metadata-only under jit

    # Divisible path: whole array through the kernel, no stitching.
    for cand in _LANE_CANDIDATES:
        if N % cand == 0:
            out2 = _run_tiled(flat.reshape(N // cand, cand), donate_input=donate_input)
            return out2.reshape(orig_shape)

    # Ragged path (N not a multiple of 128): kernel on the L-aligned prefix,
    # plain-JAX tail (< L elements), one stitch — no full-array pad/slice passes.
    L = max(c for c in _LANE_CANDIDATES if c <= N)
    prefix_len = (N // L) * L
    head_out = _run_tiled(
        flat[:prefix_len].reshape(prefix_len // L, L), donate_input=False
    ).reshape(-1)
    tail_out = _mean_act_ref(flat[prefix_len:])
    return jnp.concatenate([head_out, tail_out]).reshape(orig_shape)


if __name__ == "__main__":
    key = jax.random.PRNGKey(0)
    k1, k2, k3, k4 = jax.random.split(key, 4)

    # 1) Typical (batch, genes)-style input, forced through the Pallas kernel path.
    x1 = jax.random.normal(k1, (16, 2000), dtype=jnp.float32) * 3.0
    y1 = jax.block_until_ready(mean_act(x1, min_pallas_size=0))
    assert y1.shape == x1.shape and y1.dtype == x1.dtype
    assert jnp.allclose(y1, _mean_act_ref(x1), rtol=1e-5, atol=1e-5)

    # 2) Ragged total size (not a multiple of 128) -> prefix kernel + plain-JAX tail.
    x2 = jax.random.normal(k2, (5, 37), dtype=jnp.float32) * 3.0
    y2 = jax.block_until_ready(mean_act(x2, min_pallas_size=0))
    assert y2.shape == x2.shape and y2.dtype == x2.dtype
    assert jnp.allclose(y2, _mean_act_ref(x2), rtol=1e-5, atol=1e-5)

    # 3) Small input through the default fast-path fallback.
    x3 = jax.random.normal(k3, (8, 32), dtype=jnp.float32) * 3.0
    y3 = jax.block_until_ready(mean_act(x3))
    assert y3.shape == x3.shape and y3.dtype == x3.dtype
    assert jnp.allclose(y3, _mean_act_ref(x3), rtol=1e-5, atol=1e-5)

    # 4) bf16 input exercising the dtype-aware tiling (16-row sublane rounding).
    x4 = (jax.random.normal(k4, (32, 512), dtype=jnp.float32) * 3.0).astype(jnp.bfloat16)
    y4 = jax.block_until_ready(mean_act(x4, min_pallas_size=0))
    assert y4.shape == x4.shape and y4.dtype == x4.dtype
    assert jnp.allclose(
        y4.astype(jnp.float32), _mean_act_ref(x4).astype(jnp.float32), rtol=2e-2, atol=1e-2
    )

    print("KERNEL_OK")
</pallas_src>

<mosaic_0001>
module attributes {stable_mosaic.version = 11 : i64} {
  func.func @_mean_act_kernel(%arg0: i32, %arg1: memref<16x256xf32, #tpu.memory_space<vmem>>, %arg2: memref<16x256xf32, #tpu.memory_space<vmem>>) attributes {dimension_semantics = [#tpu.dimension_semantics<parallel>], iteration_bounds = array<i64: 8>, scalar_prefetch = 0 : i64, scratch_operands = 0 : i64, tpu.core_type = #tpu.core_type<tc>, window_params = [{transform_indices = @transform_0, window_bounds = array<i64: 16, 256>}, {transform_indices = @transform_1, window_bounds = array<i64: 16, 256>}]} {
    %c0 = arith.constant 0 : index
    %c0_0 = arith.constant 0 : index
    %0 = vector.load %arg1[%c0, %c0_0] : memref<16x256xf32, #tpu.memory_space<vmem>>, vector<16x256xf32>
    %1 = math.exp %0 : vector<16x256xf32>
    %cst = arith.constant 9.99999974E-6 : f32
    %cst_1 = arith.constant 1.000000e+06 : f32
    %2 = vector.broadcast %cst : f32 to vector<16x256xf32>
    %3 = arith.maximumf %2, %1 : vector<16x256xf32>
    %4 = vector.broadcast %cst_1 : f32 to vector<16x256xf32>
    %5 = arith.minimumf %4, %3 : vector<16x256xf32>
    %c0_2 = arith.constant 0 : index
    %c0_3 = arith.constant 0 : index
    %6 = vector.load %arg2[%c0_2, %c0_3] : memref<16x256xf32, #tpu.memory_space<vmem>>, vector<16x256xf32>
    tpu.vector_store %arg2[%c0_2, %c0_3], %5 {strides = array<i32>} : memref<16x256xf32, #tpu.memory_space<vmem>>, vector<16x256xf32>,
    return
  }
  func.func @transform_0(%arg0: i32) -> (i32, i32) {
    %c0_i32 = arith.constant 0 : i32
    %c0_i32_0 = arith.constant 0 : i32
    return %arg0, %c0_i32 : i32, i32
  }
  func.func @transform_1(%arg0: i32) -> (i32, i32) {
    %c0_i32 = arith.constant 0 : i32
    %c0_i32_0 = arith.constant 0 : i32
    return %arg0, %c0_i32 : i32, i32
  }
}

</mosaic_0001>

<llo_original>
// kernel: mean_act.1
$region0: #{mean_act.1}
  #allocation0 [shape = 'u32[]', space=smem, size = 0x4, offset = 0x4, fixed_abs, tag = 'smem constant byte address 0x4 - core index']
  #allocation1 [shape = 'u32[72,128]{1,0:T(1,128)}', space=vmem, size = 0x9000, scoped, tag = 'internal scratch']
  %s0 = inlined_call_operand.vmem [shape: f32[125,256], index: 0, kind: input, shape index: {}]
  %s1 = inlined_call_operand.vmem [shape: f32[125,256], index: 1, kind: output, shape index: {}]
  %s2 = sld [smem:[#allocation0]]
  $region37: #{mean_act.1} parent=0
    _
  %s4 = ssub.s32 1, %s2
  %s5 = scalar_select 0, %s4, %s2
  loop: start=0, step=1, limit=10
  $region2: #{mean_act.1} parent=0 // loop_pre_header
    _
  $region3: #{mean_act.1} parent=0 // loop_header
    %s7 = sphi 0, %s11
    %p8 = scmp.ge.s32.totalorder %s7, 10
    %s17 = sphi 0, %s19
    %s20 = sphi 0, %s17
    %s21 = sphi 0, %s20
    %s37 = sphi 0, %s21
    %s43 = sphi 0, %s45
    %s46 = sphi 0, %s43
    %s47 = sphi 0, %s46
    %s63 = sphi 0, %s47
  $region4: #{mean_act.1} parent=0 // loop_header_branch
    %10 = sbr.rel (%p8) target = $region8
  $region5: #{mean_act.1} parent=0 // loop_body
    %s12 = ssub.s32 %s7, 1
    %s13 = ssub.s32 %s7, 2
    %s14 = sadd.s32 %s7, 1
    %s15 = ssub.s32 %s7, %s14
    %p16 = scmp.eq.s32.totalorder %s15, 0
    %s18 = sadd.s32 %s17, 1
    %s19 = scalar_select %p16, %s17, %s18
    %p22 = pneg %p16
    %p23 = scmp.eq.s32.totalorder %s7, 7
    %p24 = por %p22, %p23
    %p25 = scmp.ne.s32.totalorder %s17, %s20
    %p26 = scmp.eq.s32.totalorder %s7, 0
    %p27 = por %p25, %p26
    %p28 = scmp.ne.s32.totalorder %s17, %s20
    %p29 = scmp.eq.s32.totalorder %s12, 7
    %p30 = por %p28, %p29
    %p31 = scmp.ne.s32.totalorder %s20, %s21
    %p32 = scmp.eq.s32.totalorder %s12, 0
    %p33 = por %p31, %p32
    %p34 = scmp.ne.s32.totalorder %s20, %s21
    %p35 = scmp.eq.s32.totalorder %s13, 7
    %p36 = por %p34, %p35
    %p38 = scmp.ne.s32.totalorder %s21, %s37
    %p39 = scmp.eq.s32.totalorder %s13, 0
    %p40 = por %p38, %p39
    %s41 = ssub.s32 %s7, %s14
    %p42 = scmp.eq.s32.totalorder %s41, 0
    %s44 = sadd.s32 %s43, 1
    %s45 = scalar_select %p42, %s43, %s44
    %p48 = pneg %p42
    %p49 = scmp.eq.s32.totalorder %s7, 7
    %p50 = por %p48, %p49
    %p51 = scmp.ne.s32.totalorder %s43, %s46
    %p52 = scmp.eq.s32.totalorder %s7, 0
    %p53 = por %p51, %p52
    %p54 = scmp.ne.s32.totalorder %s43, %s46
    %p55 = scmp.eq.s32.totalorder %s12, 7
    %p56 = por %p54, %p55
    %p57 = scmp.ne.s32.totalorder %s46, %s47
    %p58 = scmp.eq.s32.totalorder %s12, 0
    %p59 = por %p57, %p58
    %p60 = scmp.ne.s32.totalorder %s46, %s47
    %p61 = scmp.eq.s32.totalorder %s13, 7
    %p62 = por %p60, %p61
    %p64 = scmp.ne.s32.totalorder %s47, %s63
    %p65 = scmp.eq.s32.totalorder %s13, 0
    %p66 = por %p64, %p65
    %p67 = scmp.le.s32.totalorder 1, %s7
    %p68 = scmp.lt.s32.totalorder %s7, 9
    %p69 = pnand %p67, %p68
    %p70 = pneg %p69
    // Predicated region
    $region9: #{mean_act.1} parent=5 // pred_check
      _
    $region10: #{mean_act.1} parent=5 // pred_check_branch
      %72 = sbr.rel (%p69) target = $region12
    $region11: #{mean_act.1} parent=5 // pred_region
      %s73 = ssub.s32 %s7, 1
    $region12: #{mean_act.1} parent=5 // pred_fallthru
      _
    %p74 = scmp.lt.s32.totalorder %s7, 8
    // Predicated region
    $region13: #{mean_act.1} parent=5 // pred_check
      %p75 = pneg %p74
    $region14: #{mean_act.1} parent=5 // pred_check_branch
      %77 = sbr.rel (%p75) target = $region16
    $region15: #{mean_act.1} parent=5 // pred_region
      // Predicated region
      $region17: #{mean_act.1} parent=15 // pred_check
        %p78 = pneg %p27
      $region18: #{mean_act.1} parent=15 // pred_check_branch
        %80 = sbr.rel (%p78) target = $region20
      $region19: #{mean_act.1} parent=15 // pred_region
        %s81 = smul.u32 2, %s7
        %p82 = scmp.lt.s32.totalorder %s81, 15
        %s83 = scalar_select %p82, %s81, 15
        %s84 = smul.addr %s83, 2
        %s85 = smul.addr %s84, 8
        %s86 = scalar_lea.vmem %s0, %s85
        %s87 = smul.u32 2, %s7
      $region20: #{mean_act.1} parent=15 // pred_fallthru
        _
    $region16: #{mean_act.1} parent=5 // pred_fallthru
      _
    %p88 = scmp.le.s32.totalorder 1, %s7
    %p89 = scmp.lt.s32.totalorder %s7, 9
    %p90 = pnand %p88, %p89
    %p91 = pneg %p90
    // Predicated region
    $region21: #{mean_act.1} parent=5 // pred_check
      _
    $region22: #{mean_act.1} parent=5 // pred_check_branch
      %93 = sbr.rel (%p90) target = $region24
    $region23: #{mean_act.1} parent=5 // pred_region
      %s94 = ssub.s32 %s7, 1
      %s95 = smul.u32 2, %s12
      %p96 = scmp.lt.s32.totalorder %s95, 15
      %s97 = scalar_select %p96, %s95, 15
      %s98 = smul.addr %s97, 2
      %s99 = smul.addr %s98, 8
      %s100 = scalar_lea.vmem %s0, %s99
      %p101 = pneg %p33
      %p102 = pneg %p30
      %p103 = pneg %p59
      %p104 = pneg %p56
      %s105 = smul.u32 2, %s12
      %p106 = scmp.lt.s32.totalorder %s105, 15
      %s107 = scalar_select %p106, %s105, 15
      %s108 = smul.addr %s107, 2
      %s109 = smul.addr %s108, 8
      %s110 = scalar_lea.vmem %s1, %s109
      %s111 = smul.u32 2, %s12
      %p112 = scmp.lt.s32.totalorder %s111, 15
      %s113 = scalar_select %p112, %s111, 15
      %s114 = smul.addr %s113, 2
      %s115 = smul.addr %s114, 8
      %s116 = scalar_lea.vmem %s0, %s115
      %s117 = smul.u32 2, %s12
      %s118 = smul.u32 2, %s12
      %p119 = scmp.lt.s32.totalorder %s118, 15
      %s120 = scalar_select %p119, %s118, 15
      %s121 = smul.addr %s120, 2
      %s122 = smul.addr %s121, 8
      %s123 = scalar_lea.vmem %s1, %s122
      %s124 = smul.u32 2, %s12
      %v125 = vld [vmem:[%s116] sm:$0xff]
      %v126 = vld [vmem:[%s116 + $0x8] sm:$0xff]
      %v127 = vld [vmem:[%s116 + $0x10] sm:$0xff]
      %v128 = vld [vmem:[%s116 + $0x18] sm:$0xff]
      %v129 = vmul.f32 %v125, 1.442695
      %v130 = vpow.pop %v129
      %v131 = vmul.f32 %v126, 1.442695
      %v132 = vpow.pop %v131
      %v133 = vmul.f32 %v127, 1.442695
      %v134 = vpow.pop %v133
      %v135 = vmul.f32 %v128, 1.442695
      %v136 = vpow.pop %v135
      %v137 = vmax.f32 %v130, 1e-05
      %v138 = vmax.f32 %v132, 1e-05
      %v139 = vmax.f32 %v134, 1e-05
      %v140 = vmax.f32 %v136, 1e-05
      %v141 = vmin.f32 %v137, 1000000.0
      %v142 = vmin.f32 %v138, 1000000.0
      %v143 = vmin.f32 %v139, 1000000.0
      %v144 = vmin.f32 %v140, 1000000.0
      %145 = vst [vmem:[%s123] sm:$0xff] %v141
      %146 = vst [vmem:[%s123 + $0x8] sm:$0xff] %v142
      %147 = vst [vmem:[%s123 + $0x10] sm:$0xff] %v143
      %148 = vst [vmem:[%s123 + $0x18] sm:$0xff] %v144
      %s149 = smul.u32 2, %s12
      %p150 = scmp.lt.s32.totalorder %s149, 15
      %s151 = scalar_select %p150, %s149, 15
      %s152 = smul.addr %s151, 2
      %s153 = smul.addr %s152, 8
      %s154 = scalar_lea.vmem %s1, %s153
      // Predicated region
      $region25: #{mean_act.1} parent=23 // pred_check
        %p155 = pneg %p56
      $region26: #{mean_act.1} parent=23 // pred_check_branch
        %157 = sbr.rel (%p155) target = $region28
      $region27: #{mean_act.1} parent=23 // pred_region
        %s158 = smul.u32 2, %s12
      $region28: #{mean_act.1} parent=23 // pred_fallthru
        _
    $region24: #{mean_act.1} parent=5 // pred_fallthru
      _
    %p159 = scmp.le.s32.totalorder 2, %s7
    // Predicated region
    $region29: #{mean_act.1} parent=5 // pred_check
      %p160 = pneg %p159
    $region30: #{mean_act.1} parent=5 // pred_check_branch
      %162 = sbr.rel (%p160) target = $region32
    $region31: #{mean_act.1} parent=5 // pred_region
      %s163 = ssub.s32 %s7, 2
      // Predicated region
      $region33: #{mean_act.1} parent=31 // pred_check
        %p164 = pneg %p62
      $region34: #{mean_act.1} parent=31 // pred_check_branch
        %166 = sbr.rel (%p164) target = $region36
      $region35: #{mean_act.1} parent=31 // pred_region
        %s167 = smul.u32 2, %s13
        %p168 = scmp.lt.s32.totalorder %s167, 15
        %s169 = scalar_select %p168, %s167, 15
        %s170 = smul.addr %s169, 2
        %s171 = smul.addr %s170, 8
        %s172 = scalar_lea.vmem %s1, %s171
      $region36: #{mean_act.1} parent=31 // pred_fallthru
        _
    $region32: #{mean_act.1} parent=5 // pred_fallthru
      _
  $region6: #{mean_act.1} parent=0 // loop_footer
    %s11 = sadd.s32 1, %s7
  $region7: #{mean_act.1} parent=0 // loop_footer_branch
    %6 = sbr.rel target = $region3
  $region8: #{mean_act.1} parent=0 // loop_exit
    _

</llo_original>
